<compile_context>
chip_gen: v6e
topology: v6e:2x2x1
jax: 0.10.0
libtpu: 0.0.40
codegen_flags: <defaults>
</compile_context>

<pallas_src>
import jax
import jax.numpy as jnp
from jax.experimental import pallas as pl
from jax.experimental.pallas import tpu as pltpu

DIM = 32                  # self.dim
TWO_DIM = 2 * DIM         # embedding width per row  (lower | upper)
PACKED = 2 * TWO_DIM      # two rows packed per 128-lane vector
N_CONJ = 3                # number of embeddings being intersected (axis 0)
BATCH = 512               # demo batch: grid = BATCH//TB = 8  (>= 4 steps per v7x core)
TB = 64                   # batch tile (rows); multiple of 16; sweep 1024-2048 for prod
SMOOTH_PARAM = -10.0
MATMUL_DTYPE = jnp.bfloat16


def logic_intersection_kernel(emb_ref, w1_ref, b1_ref, w2_ref, b2_ref, out_ref):
    emb = emb_ref[...]                                   # (N, TB/2, 128) f32, lane-dense
    n, tbh, tdp = emb.shape

    # ---- layer1 + relu, layer2: bf16 operands on the MXU, f32 accumulate.
    # Weights are block-diagonal / column-duplicated packed forms, so the
    # second matmul directly emits the attention logits already duplicated
    # along the feature axis in the packed 128-lane layout (no in-kernel
    # concatenate / lane duplication needed downstream).
    x2 = emb.astype(MATMUL_DTYPE).reshape(n * tbh, tdp)
    h = jnp.maximum(
        jnp.dot(x2, w1_ref[...], preferred_element_type=jnp.float32) + b1_ref[...],
        0.0)
    logits2 = (jnp.dot(h.astype(MATMUL_DTYPE), w2_ref[...],
                       preferred_element_type=jnp.float32) + b2_ref[...])
    logits2 = logits2.reshape(n, tbh, tdp)               # (N, TB/2, 128)

    # ---- softmax(dim=0) followed by "/ max(att, dim=0)" simplifies
    # algebraically (mathematically exact, though not bit-for-bit vs
    # softmax-then-divide) to exp(logits - max(logits, dim=0)); fuse that exp
    # with exp(smooth_param * emb) into one full-width EUP pass.
    lm = logits2 - jnp.max(logits2, axis=0, keepdims=True)
    min_w = jnp.exp(lm + SMOOTH_PARAM * emb)             # (N, TB/2, 128)
    num = jnp.sum(min_w * emb, axis=0)                   # (TB/2, 128)
    den = jnp.sum(min_w, axis=0)                         # (TB/2, 128)

    # EUP approx reciprocal + one Newton step (~f32 accurate; den >= ~e^-10
    # so the seed is well conditioned).
    r = pl.reciprocal(den, approx=True)
    r = r * (2.0 - den * r)
    x = jnp.clip(num * r, 0.0, 1.0)                      # (TB/2, 128)

    # ---- order_bounds at full lane width.  Packed lane layout per row:
    #   [ lower(2i) | upper(2i) | lower(2i+1) | upper(2i+1) ]   (32 lanes each)
    # Pair-swap the 32-lane groups, then
    #   lower' = min(lower, mean), upper' = max(upper, mean)
    # which equals torch's where(lower>upper, mean, lower) /
    # where(lower'>upper, mean, upper) sequence exactly.
    sw = jnp.concatenate(
        [x[:, DIM:TWO_DIM], x[:, :DIM],
         x[:, TWO_DIM + DIM:], x[:, TWO_DIM:TWO_DIM + DIM]], axis=-1)
    mean = (x + sw) * 0.5
    lane = jax.lax.broadcasted_iota(jnp.int32, x.shape, 1)
    is_lower = (lane % TWO_DIM) < DIM
    out = jnp.where(is_lower, jnp.minimum(x, mean), jnp.maximum(x, mean))
    out_ref[...] = out.astype(out_ref.dtype)             # single full-width store


def _pack_weights(w1, b1, w2, b2):
    """Block-diagonal / duplicated weights for the 2-rows-per-vector packing."""
    z = jnp.zeros((TWO_DIM, TWO_DIM), jnp.float32)
    w1p = jnp.concatenate(
        [jnp.concatenate([w1, z], axis=1),
         jnp.concatenate([z, w1], axis=1)], axis=0)                  # (128, 128)
    b1p = jnp.concatenate([b1, b1], axis=-1)                         # (1, 128)
    w2d = jnp.concatenate([w2, w2], axis=1)                          # (64, 64), dup logits
    w2p = jnp.concatenate(
        [jnp.concatenate([w2d, z], axis=1),
         jnp.concatenate([z, w2d], axis=1)], axis=0)                 # (128, 128)
    b2p = jnp.concatenate([b2, b2, b2, b2], axis=-1)                 # (1, 128)
    return (w1p.astype(MATMUL_DTYPE), b1p.astype(jnp.float32),
            w2p.astype(MATMUL_DTYPE), b2p.astype(jnp.float32))


def logic_intersection(embeddings, w1, b1, w2, b2, *, tb=TB,
                       out_dtype=jnp.float32, emb_buffers=None):
    n, batch, td = embeddings.shape
    assert td == TWO_DIM
    tb = min(tb, batch)
    assert batch % tb == 0 and tb % 16 == 0, \
        "batch tile must divide batch and be a multiple of 16"
    tbh = tb // 2

    # Pack two batch rows per 128-lane vector (free, row-major reshape).
    emb_p = embeddings.reshape(n, batch // 2, PACKED)
    w1p, b1p, w2p, b2p = _pack_weights(w1, b1, w2, b2)

    # Scoped-VMEM sizing: only override the default when the working set
    # (double-buffered emb/out blocks + resident weights + f32 intermediates)
    # would exceed the smallest default (16 MiB on v5e).
    emb_block_bytes = n * tbh * PACKED * 4
    out_block_bytes = tbh * PACKED * 4
    weight_bytes = 2 * PACKED * PACKED * 2 + 2 * PACKED * 4
    vmem_est = (2 * emb_block_bytes + 2 * out_block_bytes + 2 * weight_bytes
                + 10 * emb_block_bytes)
    vmem_limit = vmem_est if vmem_est > (16 << 20) else None

    emb_spec_kwargs = {}
    if emb_buffers is not None:
        # e.g. emb_buffers=3 on v5e if a bundle dump shows exposed emb DMA waits.
        emb_spec_kwargs["pipeline_mode"] = pl.Buffered(emb_buffers)

    grid = (batch // tb,)
    out = pl.pallas_call(
        logic_intersection_kernel,
        out_shape=jax.ShapeDtypeStruct((batch // 2, PACKED), out_dtype),
        grid=grid,
        in_specs=[
            pl.BlockSpec((n, tbh, PACKED), lambda b: (0, b, 0), **emb_spec_kwargs),
            # Constant index_maps: weight/bias blocks stay resident in VMEM
            # across grid steps (no redundant per-step DMA).
            pl.BlockSpec((PACKED, PACKED), lambda b: (0, 0)),
            pl.BlockSpec((1, PACKED), lambda b: (0, 0)),
            pl.BlockSpec((PACKED, PACKED), lambda b: (0, 0)),
            pl.BlockSpec((1, PACKED), lambda b: (0, 0)),
        ],
        out_specs=pl.BlockSpec((tbh, PACKED), lambda b: (b, 0)),
        compiler_params=pltpu.CompilerParams(
            dimension_semantics=("parallel",),
            vmem_limit_bytes=vmem_limit),
    )(emb_p, w1p, b1p, w2p, b2p)
    return out.reshape(batch, TWO_DIM)


def reference(embeddings, w1, b1, w2, b2, matmul_dtype=jnp.float32):
    """Pure-JAX mirror of the PyTorch forward (use_att, 'mins', bounded).

    matmul_dtype lets us also build a reference whose matmul numerics match the
    kernel (bf16 operands, f32 accumulation) for a tight correctness check.
    """
    def mm(x, w):
        return jnp.dot(x.astype(matmul_dtype), w.astype(matmul_dtype),
                       preferred_element_type=jnp.float32)

    h = jax.nn.relu(mm(embeddings, w1) + b1)
    logits = mm(h, w2) + b2
    att = jax.nn.softmax(logits, axis=0)
    att = att / jnp.max(att, axis=0, keepdims=True)
    att = jnp.concatenate([att, att], axis=-1)
    mw = att * jnp.exp(SMOOTH_PARAM * embeddings)
    emb = jnp.sum(mw * embeddings, axis=0) / jnp.sum(mw, axis=0)
    x = jnp.clip(emb, 0.0, 1.0)
    lo, up = x[:, :DIM], x[:, DIM:]
    mean = (lo + up) / 2.0
    lo2 = jnp.where(lo > up, mean, lo)
    up2 = jnp.where(lo2 > up, mean, up)
    return jnp.concatenate([lo2, up2], axis=-1)


def xavier_uniform(key, fan_in, fan_out):
    limit = (6.0 / (fan_in + fan_out)) ** 0.5
    return jax.random.uniform(key, (fan_in, fan_out), jnp.float32, -limit, limit)


if __name__ == "__main__":
    key = jax.random.PRNGKey(0)
    k_emb, k_w1, k_b1, k_w2, k_b2 = jax.random.split(key, 5)

    # embeddings in [0, 1] (box-style embeddings), shape (N, B, 2*dim)
    embeddings = jax.random.uniform(k_emb, (N_CONJ, BATCH, TWO_DIM), jnp.float32)

    # layer1: Linear(2d -> 2d), layer2: Linear(2d -> d) (bounded=True)
    # weights stored (in_features, out_features) so x @ W == torch's x @ W.T
    w1 = xavier_uniform(k_w1, TWO_DIM, TWO_DIM)
    b1 = (jax.random.uniform(k_b1, (1, TWO_DIM), jnp.float32) - 0.5) * (2.0 / TWO_DIM ** 0.5)
    w2 = xavier_uniform(k_w2, TWO_DIM, DIM)
    b2 = (jax.random.uniform(k_b2, (1, DIM), jnp.float32) - 0.5) * (2.0 / TWO_DIM ** 0.5)

    out = jax.block_until_ready(logic_intersection(embeddings, w1, b1, w2, b2))
    assert out.shape == (BATCH, TWO_DIM)

    # Tight check vs. a reference with matching (bf16 matmul) numerics.
    ref_matched = reference(embeddings, w1, b1, w2, b2, matmul_dtype=MATMUL_DTYPE)
    err_m = float(jnp.max(jnp.abs(out - ref_matched)))
    assert err_m < 1e-3, f"matched-numerics max abs err {err_m}"

    # Loose check vs. the pure-f32 module semantics (bf16 matmul rounding).
    ref_f32 = reference(embeddings, w1, b1, w2, b2, matmul_dtype=jnp.float32)
    err_f = float(jnp.max(jnp.abs(out - ref_f32)))
    assert err_f < 2e-2, f"f32 reference max abs err {err_f}"

    print("KERNEL_OK")
</pallas_src>

<mosaic_0001>
module attributes {stable_mosaic.version = 11 : i64} {
  func.func @logic_intersection_kernel(%arg0: i32, %arg1: memref<3x32x128xf32, #tpu.memory_space<vmem>>, %arg2: memref<128x128xbf16, #tpu.memory_space<vmem>>, %arg3: memref<1x128xf32, #tpu.memory_space<vmem>>, %arg4: memref<128x128xbf16, #tpu.memory_space<vmem>>, %arg5: memref<1x128xf32, #tpu.memory_space<vmem>>, %arg6: memref<32x128xf32, #tpu.memory_space<vmem>>) attributes {dimension_semantics = [#tpu.dimension_semantics<parallel>], iteration_bounds = array<i64: 8>, scalar_prefetch = 0 : i64, scratch_operands = 0 : i64, tpu.core_type = #tpu.core_type<tc>, window_params = [{transform_indices = @transform_0, window_bounds = array<i64: 3, 32, 128>}, {pipeline_mode = #tpu.pipeline_mode<synchronous>, transform_indices = @transform_1, window_bounds = array<i64: 128, 128>}, {pipeline_mode = #tpu.pipeline_mode<synchronous>, transform_indices = @transform_2, window_bounds = array<i64: 1, 128>}, {pipeline_mode = #tpu.pipeline_mode<synchronous>, transform_indices = @transform_3, window_bounds = array<i64: 128, 128>}, {pipeline_mode = #tpu.pipeline_mode<synchronous>, transform_indices = @transform_4, window_bounds = array<i64: 1, 128>}, {transform_indices = @transform_5, window_bounds = array<i64: 32, 128>}]} {
    %c0 = arith.constant 0 : index
    %c0_0 = arith.constant 0 : index
    %c0_1 = arith.constant 0 : index
    %0 = vector.load %arg1[%c0, %c0_0, %c0_1] : memref<3x32x128xf32, #tpu.memory_space<vmem>>, vector<3x32x128xf32>
    %1 = arith.truncf %0 : vector<3x32x128xf32> to vector<3x32x128xbf16>
    %2 = vector.shape_cast %1 : vector<3x32x128xbf16> to vector<96x128xbf16>
    %c0_2 = arith.constant 0 : index
    %c0_3 = arith.constant 0 : index
    %3 = vector.load %arg2[%c0_2, %c0_3] : memref<128x128xbf16, #tpu.memory_space<vmem>>, vector<128x128xbf16>
    %cst = arith.constant dense<0.000000e+00> : vector<96x128xf32>
    %4 = tpu.matmul %2, %3, %cst {dimension_numbers = #tpu.dot_dimension_numbers<[1], [0], [0], [1], [0, 0, 1, 1], [], []>} : vector<96x128xbf16>, vector<128x128xbf16>, vector<96x128xf32> -> vector<96x128xf32>
    %c0_4 = arith.constant 0 : index
    %c0_5 = arith.constant 0 : index
    %5 = vector.load %arg3[%c0_4, %c0_5] : memref<1x128xf32, #tpu.memory_space<vmem>>, vector<1x128xf32>
    %6 = vector.broadcast %5 : vector<1x128xf32> to vector<96x128xf32>
    %7 = arith.addf %4, %6 : vector<96x128xf32>
    %cst_6 = arith.constant 0.000000e+00 : f32
    %8 = vector.broadcast %cst_6 : f32 to vector<96x128xf32>
    %9 = arith.maximumf %7, %8 : vector<96x128xf32>
    %10 = arith.truncf %9 : vector<96x128xf32> to vector<96x128xbf16>
    %c0_7 = arith.constant 0 : index
    %c0_8 = arith.constant 0 : index
    %11 = vector.load %arg4[%c0_7, %c0_8] : memref<128x128xbf16, #tpu.memory_space<vmem>>, vector<128x128xbf16>
    %cst_9 = arith.constant dense<0.000000e+00> : vector<96x128xf32>
    %12 = tpu.matmul %10, %11, %cst_9 {dimension_numbers = #tpu.dot_dimension_numbers<[1], [0], [0], [1], [0, 0, 1, 1], [], []>} : vector<96x128xbf16>, vector<128x128xbf16>, vector<96x128xf32> -> vector<96x128xf32>
    %c0_10 = arith.constant 0 : index
    %c0_11 = arith.constant 0 : index
    %13 = vector.load %arg5[%c0_10, %c0_11] : memref<1x128xf32, #tpu.memory_space<vmem>>, vector<1x128xf32>
    %14 = vector.broadcast %13 : vector<1x128xf32> to vector<96x128xf32>
    %15 = arith.addf %12, %14 : vector<96x128xf32>
    %16 = vector.shape_cast %15 : vector<96x128xf32> to vector<3x32x128xf32>
    %cst_12 = arith.constant dense<0xFF800000> : vector<32x128xf32>
    %17 = vector.multi_reduction <maximumf>, %16, %cst_12 [0] : vector<3x32x128xf32> to vector<32x128xf32>
    %18 = vector.shape_cast %17 : vector<32x128xf32> to vector<1x32x128xf32>
    %19 = vector.broadcast %18 : vector<1x32x128xf32> to vector<3x32x128xf32>
    %20 = arith.subf %16, %19 : vector<3x32x128xf32>
    %cst_13 = arith.constant -1.000000e+01 : f32
    %21 = vector.broadcast %cst_13 : f32 to vector<3x32x128xf32>
    %22 = arith.mulf %21, %0 : vector<3x32x128xf32>
    %23 = arith.addf %20, %22 : vector<3x32x128xf32>
    %24 = math.exp %23 : vector<3x32x128xf32>
    %25 = arith.mulf %24, %0 : vector<3x32x128xf32>
    %cst_14 = arith.constant dense<0.000000e+00> : vector<32x128xf32>
    %26 = vector.multi_reduction <add>, %25, %cst_14 [0] : vector<3x32x128xf32> to vector<32x128xf32>
    %cst_15 = arith.constant dense<0.000000e+00> : vector<32x128xf32>
    %27 = vector.multi_reduction <add>, %24, %cst_15 [0] : vector<3x32x128xf32> to vector<32x128xf32>
    %28 = tpu.reciprocal %27 {approx = true} : vector<32x128xf32> -> vector<32x128xf32>
    %29 = arith.mulf %27, %28 : vector<32x128xf32>
    %cst_16 = arith.constant 2.000000e+00 : f32
    %30 = vector.broadcast %cst_16 : f32 to vector<32x128xf32>
    %31 = arith.subf %30, %29 : vector<32x128xf32>
    %32 = arith.mulf %28, %31 : vector<32x128xf32>
    %33 = arith.mulf %26, %32 : vector<32x128xf32>
    %cst_17 = arith.constant 0.000000e+00 : f32
    %cst_18 = arith.constant 1.000000e+00 : f32
    %34 = vector.broadcast %cst_17 : f32 to vector<32x128xf32>
    %35 = arith.maximumf %34, %33 : vector<32x128xf32>
    %36 = vector.broadcast %cst_18 : f32 to vector<32x128xf32>
    %37 = arith.minimumf %36, %35 : vector<32x128xf32>
    %38 = vector.extract_strided_slice %37 {offsets = [0, 32], sizes = [32, 32], strides = [1, 1]} : vector<32x128xf32> to vector<32x32xf32>
    %39 = vector.extract_strided_slice %37 {offsets = [0, 0], sizes = [32, 32], strides = [1, 1]} : vector<32x128xf32> to vector<32x32xf32>
    %40 = vector.extract_strided_slice %37 {offsets = [0, 96], sizes = [32, 32], strides = [1, 1]} : vector<32x128xf32> to vector<32x32xf32>
    %41 = vector.extract_strided_slice %37 {offsets = [0, 64], sizes = [32, 32], strides = [1, 1]} : vector<32x128xf32> to vector<32x32xf32>
    %42 = tpu.concatenate %38, %39, %40, %41 in 1 : vector<32x32xf32>, vector<32x32xf32>, vector<32x32xf32>, vector<32x32xf32> -> vector<32x128xf32>
    %43 = arith.addf %37, %42 : vector<32x128xf32>
    %cst_19 = arith.constant 5.000000e-01 : f32
    %44 = vector.broadcast %cst_19 : f32 to vector<32x128xf32>
    %45 = arith.mulf %43, %44 : vector<32x128xf32>
    %46 = tpu.iota {dimensions = array<i32: 1>} : vector<32x128xi32>
    %c64_i32 = arith.constant 64 : i32
    %c0_i32 = arith.constant 0 : i32
    %47 = arith.cmpi eq, %c64_i32, %c0_i32 : i32
    %c1_i32 = arith.constant 1 : i32
    %48 = arith.select %47, %c1_i32, %c64_i32 : i32
    %49 = vector.broadcast %48 : i32 to vector<32x128xi32>
    %50 = arith.remsi %46, %49 : vector<32x128xi32>
    %c0_i32_20 = arith.constant 0 : i32
    %51 = vector.broadcast %c0_i32_20 : i32 to vector<32x128xi32>
    %52 = arith.cmpi ne, %50, %51 : vector<32x128xi32>
    %c0_i32_21 = arith.constant 0 : i32
    %53 = vector.broadcast %c0_i32_21 : i32 to vector<32x128xi32>
    %54 = arith.cmpi slt, %50, %53 : vector<32x128xi32>
    %c0_i32_22 = arith.constant 0 : i32
    %55 = arith.cmpi slt, %48, %c0_i32_22 : i32
    %56 = vector.broadcast %55 : i1 to vector<32x128xi1>
    %57 = vector.broadcast %56 : vector<32x128xi1> to vector<32x128xi1>
    %58 = arith.xori %54, %57 : vector<32x128xi1>
    %59 = arith.andi %58, %52 : vector<32x128xi1>
    %60 = vector.broadcast %48 : i32 to vector<32x128xi32>
    %61 = arith.addi %50, %60 : vector<32x128xi32>
    %62 = arith.select %59, %61, %50 : vector<32x128xi1>, vector<32x128xi32>
    %c32_i32 = arith.constant 32 : i32
    %63 = vector.broadcast %c32_i32 : i32 to vector<32x128xi32>
    %64 = arith.cmpi slt, %62, %63 : vector<32x128xi32>
    %65 = arith.minimumf %37, %45 : vector<32x128xf32>
    %66 = arith.maximumf %37, %45 : vector<32x128xf32>
    %67 = arith.select %64, %65, %66 : vector<32x128xi1>, vector<32x128xf32>
    %c0_23 = arith.constant 0 : index
    %c0_24 = arith.constant 0 : index
    %68 = vector.load %arg6[%c0_23, %c0_24] : memref<32x128xf32, #tpu.memory_space<vmem>>, vector<32x128xf32>
    tpu.vector_store %arg6[%c0_23, %c0_24], %67 {strides = array<i32>} : memref<32x128xf32, #tpu.memory_space<vmem>>, vector<32x128xf32>,
    return
  }
  func.func @transform_0(%arg0: i32) -> (i32, i32, i32) {
    %c0_i32 = arith.constant 0 : i32
    %c0_i32_0 = arith.constant 0 : i32
    %c0_i32_1 = arith.constant 0 : i32
    return %c0_i32, %arg0, %c0_i32_0 : i32, i32, i32
  }
  func.func @transform_1(%arg0: i32) -> (i32, i32) {
    %c0_i32 = arith.constant 0 : i32
    %c0_i32_0 = arith.constant 0 : i32
    %c0_i32_1 = arith.constant 0 : i32
    return %c0_i32, %c0_i32_0 : i32, i32
  }
  func.func @transform_2(%arg0: i32) -> (i32, i32) {
    %c0_i32 = arith.constant 0 : i32
    %c0_i32_0 = arith.constant 0 : i32
    %c0_i32_1 = arith.constant 0 : i32
    return %c0_i32, %c0_i32_0 : i32, i32
  }
  func.func @transform_3(%arg0: i32) -> (i32, i32) {
    %c0_i32 = arith.constant 0 : i32
    %c0_i32_0 = arith.constant 0 : i32
    %c0_i32_1 = arith.constant 0 : i32
    return %c0_i32, %c0_i32_0 : i32, i32
  }
  func.func @transform_4(%arg0: i32) -> (i32, i32) {
    %c0_i32 = arith.constant 0 : i32
    %c0_i32_0 = arith.constant 0 : i32
    %c0_i32_1 = arith.constant 0 : i32
    return %c0_i32, %c0_i32_0 : i32, i32
  }
  func.func @transform_5(%arg0: i32) -> (i32, i32) {
    %c0_i32 = arith.constant 0 : i32
    %c0_i32_0 = arith.constant 0 : i32
    return %arg0, %c0_i32 : i32, i32
  }
}

</mosaic_0001>

<llo_original>
// kernel: tpu_custom_call.1
$region0: #{tpu_custom_call.1}
  #allocation0 [shape = 'u32[]', space=smem, size = 0x4, offset = 0x4, fixed_abs, tag = 'smem constant byte address 0x4 - core index']
  #allocation1 [shape = 'u32[144,128]{1,0:T(1,128)}', space=vmem, size = 0x12000, scoped, tag = 'internal scratch']
  #allocation9 [shape = 's32[]', space=sflag, size = 0x4, offset = 0, fixed_abs, tag = 'sflag constant byte address 0x0 - dummy sync flag']
  %s0 = inlined_call_operand.hbm [shape: f32[3,256,128], index: 0, kind: input, shape index: {}]
  %s1 = inlined_call_operand.hbm [shape: bf16[128,128], index: 1, kind: input, shape index: {}]
  %s2 = inlined_call_operand.vmem [shape: f32[1,128], index: 2, kind: input, shape index: {}]
  %s3 = inlined_call_operand.hbm [shape: bf16[128,128], index: 3, kind: input, shape index: {}]
  %s4 = inlined_call_operand.vmem [shape: f32[1,128], index: 4, kind: input, shape index: {}]
  %s5 = inlined_call_operand.hbm [shape: f32[256,128], index: 5, kind: output, shape index: {}]
  %s6 = sld [smem:[#allocation0]]
  $region65: #{tpu_custom_call.1} parent=0
    _
  %s8 = ssub.s32 1, %s6
  %s9 = scalar_select 0, %s8, %s6
  $region1: #{tpu_custom_call.1} parent=0
    #allocation2 [shape = 'u8[98304]{0}', space=vmem, size = 0x18000, scoped, tag = 'input window, operand 0']
    #allocation3 [shape = 's32[2]{0}', space=sflag, size = 0x8, scoped, tag = 'scoped memory for tpu_custom_call.1']
    #allocation4 [shape = 's32[2]{0}', space=sflag, size = 0x8, scoped, tag = 'scoped memory for tpu_custom_call.1']
    #allocation5 [shape = 'u8[32768]{0}', space=vmem, size = 0x8000, scoped, tag = 'input window, operand 1, single buffered']
    #allocation6 [shape = 's32[1]{0}', space=sflag, size = 0x4, scoped, tag = 'scoped memory for tpu_custom_call.1']
    #allocation7 [shape = 'u8[32768]{0}', space=vmem, size = 0x8000, scoped, tag = 'input window, operand 3, single buffered']
    #allocation8 [shape = 'u8[32768]{0}', space=vmem, size = 0x8000, scoped, tag = 'output window, operand 0']
    %10 = vsyncpa [#allocation3], 0
    %s11 = scalar_lea.sflag [#allocation3], 1
    %12 = vsyncpa %s11, 0
    %13 = vsyncpa [#allocation6], 0
    %14 = vsyncpa [#allocation4], 0
    %s15 = scalar_lea.sflag [#allocation4], 1
    %16 = vsyncpa %s15, 0
    loop: start=0, step=1, limit=10
    $region2: #{tpu_custom_call.1} parent=1 // loop_pre_header
      _
    $region3: #{tpu_custom_call.1} parent=1 // loop_header
      %s18 = sphi 0, %s22
      %p19 = scmp.ge.s32.totalorder %s18, 10
      %s28 = sphi 0, %s30
      %s31 = sphi 0, %s28
      %s32 = sphi 0, %s31
      %s48 = sphi 0, %s32
      %s52 = sphi 0, %s52
      %s54 = sphi 0, %s52
      %s55 = sphi 0, %s54
      %s69 = sphi 0, %s55
      %s73 = sphi 0, %s73
      %s75 = sphi 0, %s73
      %s76 = sphi 0, %s75
      %s90 = sphi 0, %s76
      %s94 = sphi 0, %s94
      %s96 = sphi 0, %s94
      %s97 = sphi 0, %s96
      %s111 = sphi 0, %s97
      %s115 = sphi 0, %s115
      %s117 = sphi 0, %s115
      %s118 = sphi 0, %s117
      %s132 = sphi 0, %s118
      %s138 = sphi 0, %s140
      %s141 = sphi 0, %s138
      %s142 = sphi 0, %s141
      %s158 = sphi 0, %s142
    $region4: #{tpu_custom_call.1} parent=1 // loop_header_branch
      %21 = sbr.rel (%p19) target = $region8
    $region5: #{tpu_custom_call.1} parent=1 // loop_body
      %s23 = ssub.s32 %s18, 1
      %s24 = ssub.s32 %s18, 2
      %s25 = sadd.s32 %s18, 1
      %s26 = ssub.s32 %s18, %s25
      %p27 = scmp.eq.s32.totalorder %s26, 0
      %s29 = sadd.s32 %s28, 1
      %s30 = scalar_select %p27, %s28, %s29
      %p33 = pneg %p27
      %p34 = scmp.eq.s32.totalorder %s18, 7
      %p35 = por %p33, %p34
      %p36 = scmp.ne.s32.totalorder %s28, %s31
      %p37 = scmp.eq.s32.totalorder %s18, 0
      %p38 = por %p36, %p37
      %p39 = scmp.ne.s32.totalorder %s28, %s31
      %p40 = scmp.eq.s32.totalorder %s23, 7
      %p41 = por %p39, %p40
      %p42 = scmp.ne.s32.totalorder %s31, %s32
      %p43 = scmp.eq.s32.totalorder %s23, 0
      %p44 = por %p42, %p43
      %p45 = scmp.ne.s32.totalorder %s31, %s32
      %p46 = scmp.eq.s32.totalorder %s24, 7
      %p47 = por %p45, %p46
      %p49 = scmp.ne.s32.totalorder %s32, %s48
      %p50 = scmp.eq.s32.totalorder %s24, 0
      %p51 = por %p49, %p50
      %s53 = sadd.s32 %s52, 1
      %p56 = scmp.eq.s32.totalorder %s18, 7
      %p57 = scmp.ne.s32.totalorder %s52, %s54
      %p58 = scmp.eq.s32.totalorder %s18, 0
      %p59 = por %p57, %p58
      %p60 = scmp.ne.s32.totalorder %s52, %s54
      %p61 = scmp.eq.s32.totalorder %s23, 7
      %p62 = por %p60, %p61
      %p63 = scmp.ne.s32.totalorder %s54, %s55
      %p64 = scmp.eq.s32.totalorder %s23, 0
      %p65 = por %p63, %p64
      %p66 = scmp.ne.s32.totalorder %s54, %s55
      %p67 = scmp.eq.s32.totalorder %s24, 7
      %p68 = por %p66, %p67
      %p70 = scmp.ne.s32.totalorder %s55, %s69
      %p71 = scmp.eq.s32.totalorder %s24, 0
      %p72 = por %p70, %p71
      %s74 = sadd.s32 %s73, 1
      %p77 = scmp.eq.s32.totalorder %s18, 7
      %p78 = scmp.ne.s32.totalorder %s73, %s75
      %p79 = scmp.eq.s32.totalorder %s18, 0
      %p80 = por %p78, %p79
      %p81 = scmp.ne.s32.totalorder %s73, %s75
      %p82 = scmp.eq.s32.totalorder %s23, 7
      %p83 = por %p81, %p82
      %p84 = scmp.ne.s32.totalorder %s75, %s76
      %p85 = scmp.eq.s32.totalorder %s23, 0
      %p86 = por %p84, %p85
      %p87 = scmp.ne.s32.totalorder %s75, %s76
      %p88 = scmp.eq.s32.totalorder %s24, 7
      %p89 = por %p87, %p88
      %p91 = scmp.ne.s32.totalorder %s76, %s90
      %p92 = scmp.eq.s32.totalorder %s24, 0
      %p93 = por %p91, %p92
      %s95 = sadd.s32 %s94, 1
      %p98 = scmp.eq.s32.totalorder %s18, 7
      %p99 = scmp.ne.s32.totalorder %s94, %s96
      %p100 = scmp.eq.s32.totalorder %s18, 0
      %p101 = por %p99, %p100
      %p102 = scmp.ne.s32.totalorder %s94, %s96
      %p103 = scmp.eq.s32.totalorder %s23, 7
      %p104 = por %p102, %p103
      %p105 = scmp.ne.s32.totalorder %s96, %s97
      %p106 = scmp.eq.s32.totalorder %s23, 0
      %p107 = por %p105, %p106
      %p108 = scmp.ne.s32.totalorder %s96, %s97
      %p109 = scmp.eq.s32.totalorder %s24, 7
      %p110 = por %p108, %p109
      %p112 = scmp.ne.s32.totalorder %s97, %s111
      %p113 = scmp.eq.s32.totalorder %s24, 0
      %p114 = por %p112, %p113
      %s116 = sadd.s32 %s115, 1
      %p119 = scmp.eq.s32.totalorder %s18, 7
      %p120 = scmp.ne.s32.totalorder %s115, %s117
      %p121 = scmp.eq.s32.totalorder %s18, 0
      %p122 = por %p120, %p121
      %p123 = scmp.ne.s32.totalorder %s115, %s117
      %p124 = scmp.eq.s32.totalorder %s23, 7
      %p125 = por %p123, %p124
      %p126 = scmp.ne.s32.totalorder %s117, %s118
      %p127 = scmp.eq.s32.totalorder %s23, 0
      %p128 = por %p126, %p127
      %p129 = scmp.ne.s32.totalorder %s117, %s118
      %p130 = scmp.eq.s32.totalorder %s24, 7
      %p131 = por %p129, %p130
      %p133 = scmp.ne.s32.totalorder %s118, %s132
      %p134 = scmp.eq.s32.totalorder %s24, 0
      %p135 = por %p133, %p134
      %s136 = ssub.s32 %s18, %s25
      %p137 = scmp.eq.s32.totalorder %s136, 0
      %s139 = sadd.s32 %s138, 1
      %s140 = scalar_select %p137, %s138, %s139
      %p143 = pneg %p137
      %p144 = scmp.eq.s32.totalorder %s18, 7
      %p145 = por %p143, %p144
      %p146 = scmp.ne.s32.totalorder %s138, %s141
      %p147 = scmp.eq.s32.totalorder %s18, 0
      %p148 = por %p146, %p147
      %p149 = scmp.ne.s32.totalorder %s138, %s141
      %p150 = scmp.eq.s32.totalorder %s23, 7
      %p151 = por %p149, %p150
      %p152 = scmp.ne.s32.totalorder %s141, %s142
      %p153 = scmp.eq.s32.totalorder %s23, 0
      %p154 = por %p152, %p153
      %p155 = scmp.ne.s32.totalorder %s141, %s142
      %p156 = scmp.eq.s32.totalorder %s24, 7
      %p157 = por %p155, %p156
      %p159 = scmp.ne.s32.totalorder %s142, %s158
      %p160 = scmp.eq.s32.totalorder %s24, 0
      %p161 = por %p159, %p160
      %p162 = scmp.le.s32.totalorder 1, %s18
      %p163 = scmp.lt.s32.totalorder %s18, 9
      %p164 = pnand %p162, %p163
      %p165 = pneg %p164
      // Predicated region
      $region9: #{tpu_custom_call.1} parent=5 // pred_check
        _
      $region10: #{tpu_custom_call.1} parent=5 // pred_check_branch
        %167 = sbr.rel (%p164) target = $region12
      $region11: #{tpu_custom_call.1} parent=5 // pred_region
        %s168 = ssub.s32 %s18, 1
        // Predicated region
        $region13: #{tpu_custom_call.1} parent=11 // pred_check
          %p169 = pneg %p65
        $region14: #{tpu_custom_call.1} parent=11 // pred_check_branch
          %171 = sbr.rel (%p169) target = $region16
        $region15: #{tpu_custom_call.1} parent=11 // pred_region
          %s173 = ssub.s32 1024, 1024
          %174 = vsyncadd [#allocation6], %s173
          %s175 = sshll.u32 [#allocation5], 4
          %s176 = int_to_ptr.vmem [resolvable:$true] %s175
          %181 = dma.hbm_to_vmem [thread:$0]  %s1, 1024, %s176, [#allocation6], 64, 64, 4
        $region16: #{tpu_custom_call.1} parent=11 // pred_fallthru
          _
        // Predicated region
        $region17: #{tpu_custom_call.1} parent=11 // pred_check
          %p182 = pneg %p86
        $region18: #{tpu_custom_call.1} parent=11 // pred_check_branch
          %184 = sbr.rel (%p182) target = $region20
        $region19: #{tpu_custom_call.1} parent=11 // pred_region
          _
        $region20: #{tpu_custom_call.1} parent=11 // pred_fallthru
          _
        // Predicated region
        $region21: #{tpu_custom_call.1} parent=11 // pred_check
          %p185 = pneg %p107
        $region22: #{tpu_custom_call.1} parent=11 // pred_check_branch
          %187 = sbr.rel (%p185) target = $region24
        $region23: #{tpu_custom_call.1} parent=11 // pred_region
          %s189 = ssub.s32 1024, 1024
          %190 = vsyncadd [#allocation6], %s189
          %s191 = sshll.u32 [#allocation7], 4
          %s192 = int_to_ptr.vmem [resolvable:$true] %s191
          %197 = dma.hbm_to_vmem [thread:$0]  %s3, 1024, %s192, [#allocation6], 64, 64, 4
        $region24: #{tpu_custom_call.1} parent=11 // pred_fallthru
          _
        // Predicated region
        $region25: #{tpu_custom_call.1} parent=11 // pred_check
          %p198 = pneg %p128
        $region26: #{tpu_custom_call.1} parent=11 // pred_check_branch
          %200 = sbr.rel (%p198) target = $region28
        $region27: #{tpu_custom_call.1} parent=11 // pred_region
          _
        $region28: #{tpu_custom_call.1} parent=11 // pred_fallthru
          _
      $region12: #{tpu_custom_call.1} parent=5 // pred_fallthru
        _
      %p201 = scmp.lt.s32.totalorder %s18, 8
      // Predicated region
      $region29: #{tpu_custom_call.1} parent=5 // pred_check
        %p202 = pneg %p201
      $region30: #{tpu_custom_call.1} parent=5 // pred_check_branch
        %204 = sbr.rel (%p202) target = $region32
      $region31: #{tpu_custom_call.1} parent=5 // pred_region
        // Predicated region
        $region33: #{tpu_custom_call.1} parent=31 // pred_check
          %p205 = pneg %p38
        $region34: #{tpu_custom_call.1} parent=31 // pred_check_branch
          %207 = sbr.rel (%p205) target = $region36
        $region35: #{tpu_custom_call.1} parent=31 // pred_region
          #allocation10 [shape = 'u32[6]{0}', space=smem, size = 0x18, scoped, tag = 'DMA stride descriptor']
          %s208 = sand.u32 %s28, 1
          %s209 = scalar_lea.sflag [#allocation3], %s208
          %s210 = sand.u32 %s28, 1
          %s211 = smul.addr %s210, 96
          %s212 = scalar_lea.vmem [#allocation2], %s211
          %s213 = smul.u32 4, %s18
          %s215 = ssub.s32 1536, 1536
          %216 = vsyncadd %s209, %s215
          %s217 = smul.addr %s213, 128
          %s218 = scalar_lea.hbm %s0, %s217
          %s220 = sshll.u32 1, 14
          %s221 = sxor.u32 4294967295, %s220
          %s223 = sld [smem:[#allocation0]]
          %s224 = sadd.s32 2, %s223
          %s226 = sshll.u32 7, 26
          %s227 = sxor.u32 4294967295, %s226
          %s228 = sand.u32 0, %s227
          %s229 = sshll.u32 %s224, 26
          %s230 = sor.u32 %s228, %s229
          %s231 = sshll.u32 %s212, 4
          %s232 = int_to_ptr.vmem [resolvable:$true] %s231
          %238 = sst [smem:[#allocation10]] 4096
          %s239 = scalar_lea.smem [#allocation10], 1
          %240 = sst [smem:[%s239]] 512
          %s241 = scalar_lea.smem [#allocation10], 2
          %242 = sst [smem:[%s241]] 4
          %s243 = scalar_lea.smem [#allocation10], 3
          %244 = sst [smem:[%s243]] 128
          %s245 = scalar_lea.smem [#allocation10], 4
          %246 = sst [smem:[%s245]] 128
          %s247 = scalar_lea.smem [#allocation10], 5
          %248 = sst [smem:[%s247]] 8
          %250 = dma.general %s218, 1536, %s232, %s209, 131072, [#allocation10], %s230, 0
        $region36: #{tpu_custom_call.1} parent=31 // pred_fallthru
          _
      $region32: #{tpu_custom_call.1} parent=5 // pred_fallthru
        _
      %p251 = scmp.le.s32.totalorder 1, %s18
      %p252 = scmp.lt.s32.totalorder %s18, 9
      %p253 = pnand %p251, %p252
      %p254 = pneg %p253
      // Predicated region
      $region37: #{tpu_custom_call.1} parent=5 // pred_check
        _
      $region38: #{tpu_custom_call.1} parent=5 // pred_check_branch
        %256 = sbr.rel (%p253) target = $region40
      $region39: #{tpu_custom_call.1} parent=5 // pred_region
        %s257 = ssub.s32 %s18, 1
        %s258 = sand.u32 %s31, 1
        %s259 = scalar_lea.sflag [#allocation3], %s258
        %s260 = sand.u32 %s31, 1
        %s261 = smul.addr %s260, 96
        %s262 = scalar_lea.vmem [#allocation2], %s261
        // Predicated region
        $region41: #{tpu_custom_call.1} parent=39 // pred_check
          %p263 = pneg %p44
        $region42: #{tpu_custom_call.1} parent=39 // pred_check_branch
          %265 = sbr.rel (%p263) target = $region44
        $region43: #{tpu_custom_call.1} parent=39 // pred_region
          %266 = dma.done %s259, 1536
        $region44: #{tpu_custom_call.1} parent=39 // pred_fallthru
          _
        // Predicated region
        $region45: #{tpu_custom_call.1} parent=39 // pred_check
          %p267 = pneg %p65
        $region46: #{tpu_custom_call.1} parent=39 // pred_check_branch
          %269 = sbr.rel (%p267) target = $region48
        $region47: #{tpu_custom_call.1} parent=39 // pred_region
          %270 = dma.done [#allocation6], 1024
        $region48: #{tpu_custom_call.1} parent=39 // pred_fallthru
          _
        // Predicated region
        $region49: #{tpu_custom_call.1} parent=39 // pred_check
          %p271 = pneg %p107
        $region50: #{tpu_custom_call.1} parent=39 // pred_check_branch
          %273 = sbr.rel (%p271) target = $region52
        $region51: #{tpu_custom_call.1} parent=39 // pred_region
          %274 = dma.done [#allocation6], 1024
        $region52: #{tpu_custom_call.1} parent=39 // pred_fallthru
          _
        %s275 = sand.u32 %s31, 1
        %s276 = scalar_lea.sflag [#allocation3], %s275
        %s277 = sand.u32 %s31, 1
        %s278 = smul.addr %s277, 96
        %s279 = scalar_lea.vmem [#allocation2], %s278
        %p280 = pneg %p44
        %p281 = pneg %p41
        %p282 = pneg %p65
        %p283 = pneg %p62
        %p284 = pneg %p86
        %p285 = pneg %p83
        %p286 = pneg %p107
        %p287 = pneg %p104
        %p288 = pneg %p128
        %p289 = pneg %p125
        %p290 = pneg %p154
        %p291 = pneg %p151
        %s292 = sand.u32 %s141, 1
        %s293 = scalar_lea.sflag [#allocation4], %s292
        %s294 = sand.u32 %s141, 1
        %s295 = smul.addr %s294, 32
        %s296 = scalar_lea.vmem [#allocation8], %s295
        %s297 = smul.u32 4, %s23
        %s298 = smul.u32 4, %s23
        %v300 = vld [vmem:[%s262] sm:$0xff]
        %v301 = vld [vmem:[%s262 + $0x8] sm:$0xff]
        %v302 = vld [vmem:[%s262 + $0x10] sm:$0xff]
        %v303 = vld [vmem:[%s262 + $0x18] sm:$0xff]
        %v304 = vld [vmem:[%s262 + $0x20] sm:$0xff]
        %v305 = vld [vmem:[%s262 + $0x28] sm:$0xff]
        %v306 = vld [vmem:[%s262 + $0x30] sm:$0xff]
        %v307 = vld [vmem:[%s262 + $0x38] sm:$0xff]
        %v308 = vld [vmem:[%s262 + $0x40] sm:$0xff]
        %v309 = vld [vmem:[%s262 + $0x48] sm:$0xff]
        %v310 = vld [vmem:[%s262 + $0x50] sm:$0xff]
        %v311 = vld [vmem:[%s262 + $0x58] sm:$0xff]
        %v312 = vpack.c.bf16 %v301, %v300
        %v313 = vpack.c.bf16 %v303, %v302
        %v314 = vpack.c.bf16 %v305, %v304
        %v315 = vpack.c.bf16 %v307, %v306
        %v316 = vpack.c.bf16 %v309, %v308
        %v317 = vpack.c.bf16 %v311, %v310
        %v318 = vld [vmem:[#allocation5] sm:$0xf]
        %v319 = vld [vmem:[#allocation5 + $0x4] sm:$0xf]
        %v320 = vld [vmem:[#allocation5 + $0x8] sm:$0xf]
        %v321 = vld [vmem:[#allocation5 + $0xc] sm:$0xf]
        %v322 = vld [vmem:[#allocation5 + $0x10] sm:$0xf]
        %v323 = vld [vmem:[#allocation5 + $0x14] sm:$0xf]
        %v324 = vld [vmem:[#allocation5 + $0x18] sm:$0xf]
        %v325 = vld [vmem:[#allocation5 + $0x1c] sm:$0xf]
        %v326 = vld [vmem:[#allocation5 + $0x20] sm:$0xf]
        %v327 = vld [vmem:[#allocation5 + $0x24] sm:$0xf]
        %v328 = vld [vmem:[#allocation5 + $0x28] sm:$0xf]
        %v329 = vld [vmem:[#allocation5 + $0x2c] sm:$0xf]
        %v330 = vld [vmem:[#allocation5 + $0x30] sm:$0xf]
        %v331 = vld [vmem:[#allocation5 + $0x34] sm:$0xf]
        %v332 = vld [vmem:[#allocation5 + $0x38] sm:$0xf]
        %v333 = vld [vmem:[#allocation5 + $0x3c] sm:$0xf]
        %v334 = vld [vmem:[%s2] sm:$0x1]
        %v336 = vlaneseq
        %v337 = vshrl.u32 %v336, 7
        %v338 = vsub.s32 0, %v337
        %v339 = vrot.slane %v334, %v338
        %v357 = vunpack.c.l.b16 %v318
        %v358 = vunpack.c.l.b16 %v319
        %v359 = vunpack.c.l.b16 %v320
        %v360 = vunpack.c.l.b16 %v321
        %v361 = vunpack.c.l.b16 %v322
        %v362 = vunpack.c.l.b16 %v323
        %v363 = vunpack.c.l.b16 %v324
        %v364 = vunpack.c.l.b16 %v325
        %v365 = vunpack.c.l.b16 %v326
        %v366 = vunpack.c.l.b16 %v327
        %v367 = vunpack.c.l.b16 %v328
        %v368 = vunpack.c.l.b16 %v329
        %v369 = vunpack.c.l.b16 %v330
        %v370 = vunpack.c.l.b16 %v331
        %v371 = vunpack.c.l.b16 %v332
        %v372 = vunpack.c.l.b16 %v333
        %v373 = vpack.c.b16 %v358, %v357
        %v374 = vpack.c.b16 %v360, %v359
        %v375 = vpack.c.b16 %v362, %v361
        %v376 = vpack.c.b16 %v364, %v363
        %v377 = vpack.c.b16 %v366, %v365
        %v378 = vpack.c.b16 %v368, %v367
        %v379 = vpack.c.b16 %v370, %v369
        %v380 = vpack.c.b16 %v372, %v371
        %389 = vmatprep.subr.bf16.mxu0 0
        %390 = vmatpush1.bf16.msra.mxu0 %v380
        %391 = vmatprep.subr.bf16.mxu0 0
        %392 = vmatpush1.bf16.msra.mxu0 %v379
        %393 = vmatprep.subr.bf16.mxu0 0
        %394 = vmatpush1.bf16.msra.mxu0 %v378
        %395 = vmatprep.subr.bf16.mxu0 0
        %396 = vmatpush1.bf16.msra.mxu0 %v377
        %397 = vmatprep.subr.bf16.mxu0 0
        %398 = vmatpush1.bf16.msra.mxu0 %v376
        %399 = vmatprep.subr.bf16.mxu0 0
        %400 = vmatpush1.bf16.msra.mxu0 %v375
        %401 = vmatprep.subr.bf16.mxu0 0
        %402 = vmatpush1.bf16.msra.mxu0 %v374
        %403 = vmatprep.subr.bf16.mxu0 0
        %404 = vmatpush1.bf16.msra.mxu0 %v373
        %405 = vmatprep.subr.bf16.mxu0 0
        %406 = vmatpush2.bf16.msra.mxu0 0
        %407 = vmatprep.subr.bf16.mxu0 0
        %408 = vmatpush2.bf16.msra.mxu0 0
        %409 = vmatprep.subr.bf16.mxu0 0
        %410 = vmatpush2.bf16.msra.mxu0 0
        %411 = vmatprep.subr.bf16.mxu0 0
        %412 = vmatpush2.bf16.msra.mxu0 0
        %413 = vmatprep.subr.bf16.mxu0 0
        %414 = vmatpush2.bf16.msra.mxu0 0
        %415 = vmatprep.subr.bf16.mxu0 0
        %416 = vmatpush2.bf16.msra.mxu0 0
        %417 = vmatprep.subr.bf16.mxu0 0
        %418 = vmatpush2.bf16.msra.mxu0 0
        %419 = vmatprep.subr.bf16.mxu0 0
        %420 = vmatpush2.bf16.msra.mxu0 0
        %421 = vmatprep.mubr.bf16.mxu0 0
        %422 = vmatmul.mubr.bf16.gmra.mxu0 %v312
        %v423 = vpop.f32.mrf.mxu0
        %v424 = vadd.f32 %v339, %v423
        %v425 = vpop.f32.mrf.mxu0
        %v426 = vpop.f32.mrf.mxu0
        %v427 = vadd.f32 %v339, %v426
        %v428 = vpop.f32.mrf.mxu0
        %429 = vmatprep.mubr.bf16.mxu0 0
        %430 = vmatmul.mubr.bf16.gmra.mxu0 %v313
        %v431 = vpop.f32.mrf.mxu0
        %v432 = vadd.f32 %v339, %v431
        %v433 = vpop.f32.mrf.mxu0
        %v434 = vpop.f32.mrf.mxu0
        %v435 = vadd.f32 %v339, %v434
        %v436 = vpop.f32.mrf.mxu0
        %437 = vmatprep.mubr.bf16.mxu0 0
        %438 = vmatmul.mubr.bf16.gmra.mxu0 %v314
        %v439 = vpop.f32.mrf.mxu0
        %v440 = vadd.f32 %v339, %v439
        %v441 = vpop.f32.mrf.mxu0
        %v442 = vpop.f32.mrf.mxu0
        %v443 = vadd.f32 %v339, %v442
        %v444 = vpop.f32.mrf.mxu0
        %445 = vmatprep.mubr.bf16.mxu0 0
        %446 = vmatmul.mubr.bf16.gmra.mxu0 %v315
        %v447 = vpop.f32.mrf.mxu0
        %v448 = vadd.f32 %v339, %v447
        %v449 = vpop.f32.mrf.mxu0
        %v450 = vpop.f32.mrf.mxu0
        %v451 = vadd.f32 %v339, %v450
        %v452 = vpop.f32.mrf.mxu0
        %453 = vmatprep.mubr.bf16.mxu0 0
        %454 = vmatmul.mubr.bf16.gmra.mxu0 %v316
        %v455 = vpop.f32.mrf.mxu0
        %v456 = vadd.f32 %v339, %v455
        %v457 = vpop.f32.mrf.mxu0
        %v458 = vpop.f32.mrf.mxu0
        %v459 = vadd.f32 %v339, %v458
        %v460 = vpop.f32.mrf.mxu0
        %461 = vmatprep.mubr.bf16.mxu0 0
        %462 = vmatmul.mubr.bf16.gmra.mxu0 %v317
        %v463 = vpop.f32.mrf.mxu0
        %v464 = vadd.f32 %v339, %v463
        %v465 = vpop.f32.mrf.mxu0
        %v466 = vpop.f32.mrf.mxu0
        %v467 = vadd.f32 %v339, %v466
        %v468 = vpop.f32.mrf.mxu0
        %469 = vdwg.mxu0
        %v470 = vmax.f32 %v424, 0.0
        %v471 = vmax.f32 %v427, 0.0
        %v472 = vmax.f32 %v432, 0.0
        %v473 = vmax.f32 %v435, 0.0
        %v474 = vmax.f32 %v440, 0.0
        %v475 = vmax.f32 %v443, 0.0
        %v476 = vmax.f32 %v448, 0.0
        %v477 = vmax.f32 %v451, 0.0
        %v478 = vmax.f32 %v456, 0.0
        %v479 = vmax.f32 %v459, 0.0
        %v480 = vmax.f32 %v464, 0.0
        %v481 = vmax.f32 %v467, 0.0
        %v482 = vpack.c.bf16 %v471, %v470
        %v483 = vpack.c.bf16 %v473, %v472
        %v484 = vpack.c.bf16 %v475, %v474
        %v485 = vpack.c.bf16 %v477, %v476
        %v486 = vpack.c.bf16 %v479, %v478
        %v487 = vpack.c.bf16 %v481, %v480
        %v488 = vld [vmem:[#allocation7] sm:$0xf]
        %v489 = vld [vmem:[#allocation7 + $0x4] sm:$0xf]
        %v490 = vld [vmem:[#allocation7 + $0x8] sm:$0xf]
        %v491 = vld [vmem:[#allocation7 + $0xc] sm:$0xf]
        %v492 = vld [vmem:[#allocation7 + $0x10] sm:$0xf]
        %v493 = vld [vmem:[#allocation7 + $0x14] sm:$0xf]
        %v494 = vld [vmem:[#allocation7 + $0x18] sm:$0xf]
        %v495 = vld [vmem:[#allocation7 + $0x1c] sm:$0xf]
        %v496 = vld [vmem:[#allocation7 + $0x20] sm:$0xf]
        %v497 = vld [vmem:[#allocation7 + $0x24] sm:$0xf]
        %v498 = vld [vmem:[#allocation7 + $0x28] sm:$0xf]
        %v499 = vld [vmem:[#allocation7 + $0x2c] sm:$0xf]
        %v500 = vld [vmem:[#allocation7 + $0x30] sm:$0xf]
        %v501 = vld [vmem:[#allocation7 + $0x34] sm:$0xf]
        %v502 = vld [vmem:[#allocation7 + $0x38] sm:$0xf]
        %v503 = vld [vmem:[#allocation7 + $0x3c] sm:$0xf]
        %v504 = vld [vmem:[%s4] sm:$0x1]
        %v506 = vlaneseq
        %v507 = vshrl.u32 %v506, 7
        %v508 = vsub.s32 0, %v507
        %v509 = vrot.slane %v504, %v508
        %v527 = vunpack.c.l.b16 %v488
        %v528 = vunpack.c.l.b16 %v489
        %v529 = vunpack.c.l.b16 %v490
        %v530 = vunpack.c.l.b16 %v491
        %v531 = vunpack.c.l.b16 %v492
        %v532 = vunpack.c.l.b16 %v493
        %v533 = vunpack.c.l.b16 %v494
        %v534 = vunpack.c.l.b16 %v495
        %v535 = vunpack.c.l.b16 %v496
        %v536 = vunpack.c.l.b16 %v497
        %v537 = vunpack.c.l.b16 %v498
        %v538 = vunpack.c.l.b16 %v499
        %v539 = vunpack.c.l.b16 %v500
        %v540 = vunpack.c.l.b16 %v501
        %v541 = vunpack.c.l.b16 %v502
        %v542 = vunpack.c.l.b16 %v503
        %v543 = vpack.c.b16 %v528, %v527
        %v544 = vpack.c.b16 %v530, %v529
        %v545 = vpack.c.b16 %v532, %v531
        %v546 = vpack.c.b16 %v534, %v533
        %v547 = vpack.c.b16 %v536, %v535
        %v548 = vpack.c.b16 %v538, %v537
        %v549 = vpack.c.b16 %v540, %v539
        %v550 = vpack.c.b16 %v542, %v541
        %559 = vmatprep.subr.bf16.mxu0 0
        %560 = vmatpush1.bf16.msra.mxu0 %v550
        %561 = vmatprep.subr.bf16.mxu0 0
        %562 = vmatpush1.bf16.msra.mxu0 %v549
        %563 = vmatprep.subr.bf16.mxu0 0
        %564 = vmatpush1.bf16.msra.mxu0 %v548
        %565 = vmatprep.subr.bf16.mxu0 0
        %566 = vmatpush1.bf16.msra.mxu0 %v547
        %567 = vmatprep.subr.bf16.mxu0 0
        %568 = vmatpush1.bf16.msra.mxu0 %v546
        %569 = vmatprep.subr.bf16.mxu0 0
        %570 = vmatpush1.bf16.msra.mxu0 %v545
        %571 = vmatprep.subr.bf16.mxu0 0
        %572 = vmatpush1.bf16.msra.mxu0 %v544
        %573 = vmatprep.subr.bf16.mxu0 0
        %574 = vmatpush1.bf16.msra.mxu0 %v543
        %575 = vmatprep.subr.bf16.mxu0 0
        %576 = vmatpush2.bf16.msra.mxu0 0
        %577 = vmatprep.subr.bf16.mxu0 0
        %578 = vmatpush2.bf16.msra.mxu0 0
        %579 = vmatprep.subr.bf16.mxu0 0
        %580 = vmatpush2.bf16.msra.mxu0 0
        %581 = vmatprep.subr.bf16.mxu0 0
        %582 = vmatpush2.bf16.msra.mxu0 0
        %583 = vmatprep.subr.bf16.mxu0 0
        %584 = vmatpush2.bf16.msra.mxu0 0
        %585 = vmatprep.subr.bf16.mxu0 0
        %586 = vmatpush2.bf16.msra.mxu0 0
        %587 = vmatprep.subr.bf16.mxu0 0
        %588 = vmatpush2.bf16.msra.mxu0 0
        %589 = vmatprep.subr.bf16.mxu0 0
        %590 = vmatpush2.bf16.msra.mxu0 0
        %591 = vmatprep.mubr.bf16.mxu0 0
        %592 = vmatmul.mubr.bf16.gmra.mxu0 %v482
        %v593 = vpop.f32.mrf.mxu0
        %v594 = vadd.f32 %v509, %v593
        %v595 = vpop.f32.mrf.mxu0
        %v596 = vpop.f32.mrf.mxu0
        %v597 = vadd.f32 %v509, %v596
        %v598 = vpop.f32.mrf.mxu0
        %599 = vmatprep.mubr.bf16.mxu0 0
        %600 = vmatmul.mubr.bf16.gmra.mxu0 %v483
        %v601 = vpop.f32.mrf.mxu0
        %v602 = vadd.f32 %v509, %v601
        %v603 = vpop.f32.mrf.mxu0
        %v604 = vpop.f32.mrf.mxu0
        %v605 = vadd.f32 %v509, %v604
        %v606 = vpop.f32.mrf.mxu0
        %607 = vmatprep.mubr.bf16.mxu0 0
        %608 = vmatmul.mubr.bf16.gmra.mxu0 %v484
        %v609 = vpop.f32.mrf.mxu0
        %v610 = vadd.f32 %v509, %v609
        %v611 = vpop.f32.mrf.mxu0
        %v612 = vpop.f32.mrf.mxu0
        %v613 = vadd.f32 %v509, %v612
        %v614 = vpop.f32.mrf.mxu0
        %615 = vmatprep.mubr.bf16.mxu0 0
        %616 = vmatmul.mubr.bf16.gmra.mxu0 %v485
        %v617 = vpop.f32.mrf.mxu0
        %v618 = vadd.f32 %v509, %v617
        %v619 = vpop.f32.mrf.mxu0
        %v620 = vpop.f32.mrf.mxu0
        %v621 = vadd.f32 %v509, %v620
        %v622 = vpop.f32.mrf.mxu0
        %623 = vmatprep.mubr.bf16.mxu0 0
        %624 = vmatmul.mubr.bf16.gmra.mxu0 %v486
        %v625 = vpop.f32.mrf.mxu0
        %v626 = vadd.f32 %v509, %v625
        %v627 = vpop.f32.mrf.mxu0
        %v628 = vpop.f32.mrf.mxu0
        %v629 = vadd.f32 %v509, %v628
        %v630 = vpop.f32.mrf.mxu0
        %631 = vmatprep.mubr.bf16.mxu0 0
        %632 = vmatmul.mubr.bf16.gmra.mxu0 %v487
        %v633 = vpop.f32.mrf.mxu0
        %v634 = vadd.f32 %v509, %v633
        %v635 = vpop.f32.mrf.mxu0
        %v636 = vpop.f32.mrf.mxu0
        %v637 = vadd.f32 %v509, %v636
        %v638 = vpop.f32.mrf.mxu0
        %639 = vdwg.mxu0
        %v640 = vmax.f32 %v594, %v610
        %v641 = vmax.f32 %v640, %v626
        %v642 = vmax.f32 %v597, %v613
        %v643 = vmax.f32 %v642, %v629
        %v644 = vmax.f32 %v602, %v618
        %v645 = vmax.f32 %v644, %v634
        %v646 = vmax.f32 %v605, %v621
        %v647 = vmax.f32 %v646, %v637
        %v648 = vsub.f32 %v594, %v641
        %v649 = vsub.f32 %v597, %v643
        %v650 = vsub.f32 %v602, %v645
        %v651 = vsub.f32 %v605, %v647
        %v652 = vsub.f32 %v610, %v641
        %v653 = vsub.f32 %v613, %v643
        %v654 = vsub.f32 %v618, %v645
        %v655 = vsub.f32 %v621, %v647
        %v656 = vsub.f32 %v626, %v641
        %v657 = vsub.f32 %v629, %v643
        %v658 = vsub.f32 %v634, %v645
        %v659 = vsub.f32 %v637, %v647
        %v660 = vmul.f32 %v300, -10.0
        %v661 = vmul.f32 %v301, -10.0
        %v662 = vmul.f32 %v302, -10.0
        %v663 = vmul.f32 %v303, -10.0
        %v664 = vmul.f32 %v304, -10.0
        %v665 = vmul.f32 %v305, -10.0
        %v666 = vmul.f32 %v306, -10.0
        %v667 = vmul.f32 %v307, -10.0
        %v668 = vmul.f32 %v308, -10.0
        %v669 = vmul.f32 %v309, -10.0
        %v670 = vmul.f32 %v310, -10.0
        %v671 = vmul.f32 %v311, -10.0
        %v672 = vadd.f32 %v648, %v660
        %v673 = vadd.f32 %v649, %v661
        %v674 = vadd.f32 %v650, %v662
        %v675 = vadd.f32 %v651, %v663
        %v676 = vadd.f32 %v652, %v664
        %v677 = vadd.f32 %v653, %v665
        %v678 = vadd.f32 %v654, %v666
        %v679 = vadd.f32 %v655, %v667
        %v680 = vadd.f32 %v656, %v668
        %v681 = vadd.f32 %v657, %v669
        %v682 = vadd.f32 %v658, %v670
        %v683 = vadd.f32 %v659, %v671
        %v684 = vmul.f32 %v672, 1.442695
        %v685 = vpow.pop %v684
        %v686 = vmul.f32 %v673, 1.442695
        %v687 = vpow.pop %v686
        %v688 = vmul.f32 %v674, 1.442695
        %v689 = vpow.pop %v688
        %v690 = vmul.f32 %v675, 1.442695
        %v691 = vpow.pop %v690
        %v692 = vmul.f32 %v676, 1.442695
        %v693 = vpow.pop %v692
        %v694 = vmul.f32 %v677, 1.442695
        %v695 = vpow.pop %v694
        %v696 = vmul.f32 %v678, 1.442695
        %v697 = vpow.pop %v696
        %v698 = vmul.f32 %v679, 1.442695
        %v699 = vpow.pop %v698
        %v700 = vmul.f32 %v680, 1.442695
        %v701 = vpow.pop %v700
        %v702 = vmul.f32 %v681, 1.442695
        %v703 = vpow.pop %v702
        %v704 = vmul.f32 %v682, 1.442695
        %v705 = vpow.pop %v704
        %v706 = vmul.f32 %v683, 1.442695
        %v707 = vpow.pop %v706
        %v708 = vmul.f32 %v685, %v300
        %v709 = vmul.f32 %v687, %v301
        %v710 = vmul.f32 %v689, %v302
        %v711 = vmul.f32 %v691, %v303
        %v712 = vmul.f32 %v693, %v304
        %v713 = vmul.f32 %v695, %v305
        %v714 = vmul.f32 %v697, %v306
        %v715 = vmul.f32 %v699, %v307
        %v716 = vmul.f32 %v701, %v308
        %v717 = vmul.f32 %v703, %v309
        %v718 = vmul.f32 %v705, %v310
        %v719 = vmul.f32 %v707, %v311
        %v720 = vadd.f32 %v708, %v712
        %v721 = vadd.f32 %v720, %v716
        %v722 = vadd.f32 %v709, %v713
        %v723 = vadd.f32 %v722, %v717
        %v724 = vadd.f32 %v710, %v714
        %v725 = vadd.f32 %v724, %v718
        %v726 = vadd.f32 %v711, %v715
        %v727 = vadd.f32 %v726, %v719
        %v728 = vadd.f32 %v685, %v693
        %v729 = vadd.f32 %v728, %v701
        %v730 = vadd.f32 %v687, %v695
        %v731 = vadd.f32 %v730, %v703
        %v732 = vadd.f32 %v689, %v697
        %v733 = vadd.f32 %v732, %v705
        %v734 = vadd.f32 %v691, %v699
        %v735 = vadd.f32 %v734, %v707
        %v736 = vrcp.pop %v729
        %v737 = vrcp.pop %v731
        %v738 = vrcp.pop %v733
        %v739 = vrcp.pop %v735
        %v740 = vmul.f32 %v729, %v736
        %v741 = vmul.f32 %v731, %v737
        %v742 = vmul.f32 %v733, %v738
        %v743 = vmul.f32 %v735, %v739
        %v744 = vsub.f32 2.0, %v740
        %v745 = vsub.f32 2.0, %v741
        %v746 = vsub.f32 2.0, %v742
        %v747 = vsub.f32 2.0, %v743
        %v748 = vmul.f32 %v736, %v744
        %v749 = vmul.f32 %v737, %v745
        %v750 = vmul.f32 %v738, %v746
        %v751 = vmul.f32 %v739, %v747
        %v752 = vmul.f32 %v721, %v748
        %v753 = vmul.f32 %v723, %v749
        %v754 = vmul.f32 %v725, %v750
        %v755 = vmul.f32 %v727, %v751
        %v756 = vmax.f32 %v752, 0.0
        %v757 = vmax.f32 %v753, 0.0
        %v758 = vmax.f32 %v754, 0.0
        %v759 = vmax.f32 %v755, 0.0
        %v760 = vmin.f32 %v756, 1.0
        %v761 = vmin.f32 %v757, 1.0
        %v762 = vmin.f32 %v758, 1.0
        %v763 = vmin.f32 %v759, 1.0
        %768 = vrot.lane.b32.xlu0 %v760, 96
        %v769 = vpop.permute.xlu0 %768
        %770 = vrot.lane.b32.xlu0 %v761, 96
        %v771 = vpop.permute.xlu0 %770
        %772 = vrot.lane.b32.xlu0 %v762, 96
        %v773 = vpop.permute.xlu0 %772
        %774 = vrot.lane.b32.xlu0 %v763, 96
        %v775 = vpop.permute.xlu0 %774
        %780 = vrot.lane.b32.xlu0 %v760, 32
        %v781 = vpop.permute.xlu0 %780
        %782 = vrot.lane.b32.xlu0 %v761, 32
        %v783 = vpop.permute.xlu0 %782
        %784 = vrot.lane.b32.xlu0 %v762, 32
        %v785 = vpop.permute.xlu0 %784
        %786 = vrot.lane.b32.xlu0 %v763, 32
        %v787 = vpop.permute.xlu0 %786
        %vm792 = vcmask 261120
        %v793 = vsel %vm792, %v769, %v781
        %v794 = vsel %vm792, %v771, %v783
        %v795 = vsel %vm792, %v773, %v785
        %v796 = vsel %vm792, %v775, %v787
        %vm797 = vcmask 523264
        %v798 = vsel %vm797, %v793, %v769
        %v799 = vsel %vm797, %v794, %v771
        %v800 = vsel %vm797, %v795, %v773
        %v801 = vsel %vm797, %v796, %v775
        %vm802 = vcmask 785408
        %v803 = vsel %vm802, %v798, %v781
        %v804 = vsel %vm802, %v799, %v783
        %v805 = vsel %vm802, %v800, %v785
        %v806 = vsel %vm802, %v801, %v787
        %v807 = vadd.f32 %v760, %v803
        %v808 = vadd.f32 %v761, %v804
        %v809 = vadd.f32 %v762, %v805
        %v810 = vadd.f32 %v763, %v806
        %v811 = vmul.f32 %v807, 0.5
        %v812 = vmul.f32 %v808, 0.5
        %v813 = vmul.f32 %v809, 0.5
        %v814 = vmul.f32 %v810, 0.5
        %v815 = vlaneseq
        %v816 = vand.u32 %v815, 127
        %vm817 = vcmp.lt.s32.totalorder %v816, 0
        %v818 = vsub.s32 0, %v816
        %v819 = vsel %vm817, %v818, %v816
        %v820 = vshrl.u32 %v819, 6
        %v821 = vand.u32 %v819, 63
        %v822 = vsub.s32 0, %v821
        %v823 = vsel %vm817, %v822, %v821
        %vm824 = vcmp.ne.s32.totalorder %v823, 0
        %vm825 = vcmp.lt.s32.totalorder %v823, 0
        %vm826 = vmand %vm825, %vm824
        %v827 = vadd.s32 %v823, 64
        %v828 = vsel %vm826, %v827, %v823
        %vm829 = vcmp.lt.s32.totalorder %v828, 32
        %v830 = vmin.f32 %v760, %v811
        %v831 = vmin.f32 %v761, %v812
        %v832 = vmin.f32 %v762, %v813
        %v833 = vmin.f32 %v763, %v814
        %v834 = vmax.f32 %v760, %v811
        %v835 = vmax.f32 %v761, %v812
        %v836 = vmax.f32 %v762, %v813
        %v837 = vmax.f32 %v763, %v814
        %v838 = vsel %vm829, %v830, %v834
        %v839 = vsel %vm829, %v831, %v835
        %v840 = vsel %vm829, %v832, %v836
        %v841 = vsel %vm829, %v833, %v837
        %842 = vst [vmem:[%s296] sm:$0xff] %v838
        %843 = vst [vmem:[%s296 + $0x8] sm:$0xff] %v839
        %844 = vst [vmem:[%s296 + $0x10] sm:$0xff] %v840
        %845 = vst [vmem:[%s296 + $0x18] sm:$0xff] %v841
        %s846 = sand.u32 %s141, 1
        %s847 = scalar_lea.sflag [#allocation4], %s846
        %s848 = sand.u32 %s141, 1
        %s849 = smul.addr %s848, 32
        %s850 = scalar_lea.vmem [#allocation8], %s849
        // Predicated region
        $region53: #{tpu_custom_call.1} parent=39 // pred_check
          %p851 = pneg %p151
        $region54: #{tpu_custom_call.1} parent=39 // pred_check_branch
          %853 = sbr.rel (%p851) target = $region56
        $region55: #{tpu_custom_call.1} parent=39 // pred_region
          %s854 = smul.u32 4, %s23
          %s856 = ssub.s32 512, 512
          %857 = vsyncadd %s847, %s856
          %s858 = smul.addr %s854, 128
          %s859 = scalar_lea.hbm %s5, %s858
          %s860 = sshll.u32 %s850, 4
          %s861 = int_to_ptr.vmem [resolvable:$true] %s860
          %866 = dma.vmem_to_hbm [thread:$0]  %s861, 512, %s859, %s847, 128, 128, 8
        $region56: #{tpu_custom_call.1} parent=39 // pred_fallthru
          _
      $region40: #{tpu_custom_call.1} parent=5 // pred_fallthru
        _
      %p867 = scmp.le.s32.totalorder 2, %s18
      // Predicated region
      $region57: #{tpu_custom_call.1} parent=5 // pred_check
        %p868 = pneg %p867
      $region58: #{tpu_custom_call.1} parent=5 // pred_check_branch
        %870 = sbr.rel (%p868) target = $region60
      $region59: #{tpu_custom_call.1} parent=5 // pred_region
        %s871 = ssub.s32 %s18, 2
        // Predicated region
        $region61: #{tpu_custom_call.1} parent=59 // pred_check
          %p872 = pneg %p157
        $region62: #{tpu_custom_call.1} parent=59 // pred_check_branch
          %874 = sbr.rel (%p872) target = $region64
        $region63: #{tpu_custom_call.1} parent=59 // pred_region
          %s875 = sand.u32 %s142, 1
          %s876 = scalar_lea.sflag [#allocation4], %s875
          %s877 = sand.u32 %s142, 1
          %s878 = smul.addr %s877, 32
          %s879 = scalar_lea.vmem [#allocation8], %s878
          %880 = dma.done %s876, 512
        $region64: #{tpu_custom_call.1} parent=59 // pred_fallthru
          _
      $region60: #{tpu_custom_call.1} parent=5 // pred_fallthru
        _
    $region6: #{tpu_custom_call.1} parent=1 // loop_footer
      %s22 = sadd.s32 1, %s18
    $region7: #{tpu_custom_call.1} parent=1 // loop_footer_branch
      %17 = sbr.rel target = $region3
    $region8: #{tpu_custom_call.1} parent=1 // loop_exit
      _
    %881 = vsyncpa [#allocation3], 1
    %s882 = scalar_lea.sflag [#allocation3], 1
    %883 = vsyncpa %s882, 1
    %884 = vsyncpa [#allocation6], 1
    %885 = vsyncpa [#allocation4], 1
    %s886 = scalar_lea.sflag [#allocation4], 1
    %887 = vsyncpa %s886, 1

</llo_original>
